<compile_context>
chip_gen: v7x
topology: tpu7x:2x2x1
jax: 0.10.0
libtpu: 0.0.40
codegen_flags: <defaults>
</compile_context>

<pallas_src>
import functools
import math

import jax
import jax.numpy as jnp
from jax.experimental import pallas as pl
from jax.experimental.pallas import tpu as pltpu

EPS = 1e-8

# Byte budget for ONE row tile across all streamed arrays (single buffer).
# The pipeline double-buffers, so streamed VMEM = 2x this.
_REDUCE_BLOCK_BYTES = 4 * 1024 * 1024   # fit/update: 1 stream  ->  8 MiB streamed
_NORM_BLOCK_BYTES = 6 * 1024 * 1024     # normalize: in + out   -> 12 MiB streamed
_ROW_TILE_CAP_REDUCE = 32768            # sanity cap; VMEM budget binds first
_ROW_TILE_CAP_NORM = 8192
_VMEM_LIMIT = 32 * 1024 * 1024          # == v6e/v7x default scoped, raises v5e's 16 MiB
_CORE_SPLIT = 2                         # leading "parallel" axis for the reductions


def _row_tile(n_rows: int, bytes_per_row: int, *, block_bytes: int,
              cap: int, min_steps: int = 1) -> int:
    """Pick a row tile R for the flattened (N, D) view.

    R is a multiple of 8 (sublane) or equals the full row count N.
    """
    r = block_bytes // max(bytes_per_row, 1)
    r = min(r, cap, n_rows)
    if min_steps > 1:
        r = min(r, pl.cdiv(n_rows, min_steps))
    if r >= n_rows:
        return n_rows
    r = (r // 8) * 8
    return r if r >= 8 else n_rows


# --------------------------------------------------------------------------
# Kernels
# --------------------------------------------------------------------------
def _fit_kernel(x_ref, sum_ref, sq_ref, *,
                n_rows: int, rows_per_block: int, blocks_per_core: int,
                masked_path: bool):
    """Per-core partial sums of x and x*x over this core's row blocks.

    sum_ref / sq_ref are (1, 1, D) blocks of the (CORE_SPLIT, 1, D) partials,
    resident across the inner ("arbitrary") grid axis.
    """
    c = pl.program_id(0)
    i = pl.program_id(1)

    @pl.when(i == 0)
    def _():
        sum_ref[...] = jnp.zeros_like(sum_ref)
        sq_ref[...] = jnp.zeros_like(sq_ref)

    x = x_ref[...].astype(jnp.float32)                    # (R, D), upcast in-register

    def _acc(xv):
        sum_ref[...] += jnp.sum(xv, axis=0, keepdims=True)[None]
        sq_ref[...] += jnp.sum(xv * xv, axis=0, keepdims=True)[None]

    if not masked_path:
        _acc(x)
    else:
        row0 = (c * blocks_per_core + i) * rows_per_block   # logical (unclamped) origin

        @pl.when(row0 + rows_per_block <= n_rows)           # interior block: no masking
        def _():
            _acc(x)

        @pl.when(row0 + rows_per_block > n_rows)            # boundary / beyond-end block
        def _():
            rows = jax.lax.broadcasted_iota(jnp.int32, (x.shape[0], 1), 0) + row0
            _acc(jnp.where(rows < n_rows, x, 0.0))


def _update_kernel(x_ref, mean_ref, sumd_ref, sumd2_ref, *,
                   n_rows: int, rows_per_block: int, blocks_per_core: int,
                   masked_path: bool):
    """Per-core partial sums of delta and delta^2, delta = x - old_mean."""
    c = pl.program_id(0)
    i = pl.program_id(1)

    @pl.when(i == 0)
    def _():
        sumd_ref[...] = jnp.zeros_like(sumd_ref)
        sumd2_ref[...] = jnp.zeros_like(sumd2_ref)

    x = x_ref[...].astype(jnp.float32)                    # (R, D)
    delta = x - mean_ref[...]                             # (1, D) broadcast

    def _acc(dv):
        sumd_ref[...] += jnp.sum(dv, axis=0, keepdims=True)[None]
        sumd2_ref[...] += jnp.sum(dv * dv, axis=0, keepdims=True)[None]

    if not masked_path:
        _acc(delta)
    else:
        row0 = (c * blocks_per_core + i) * rows_per_block

        @pl.when(row0 + rows_per_block <= n_rows)
        def _():
            _acc(delta)

        @pl.when(row0 + rows_per_block > n_rows)
        def _():
            rows = jax.lax.broadcasted_iota(jnp.int32, (delta.shape[0], 1), 0) + row0
            _acc(jnp.where(rows < n_rows, delta, 0.0))


def _normalize_kernel(x_ref, mean_ref, var_ref, out_ref):
    """Hot path: (x - mean) / (sqrt(var) + eps) as one mul + one add per element."""
    var = var_ref[...]                                    # (1, D)
    inv_std = 1.0 / (jnp.sqrt(var) + EPS)                 # exact, once per block
    shift = -mean_ref[...] * inv_std
    x = x_ref[...].astype(jnp.float32)                    # (R, D)
    out_ref[...] = (x * inv_std + shift).astype(out_ref.dtype)


# --------------------------------------------------------------------------
# pallas_call wrappers
# --------------------------------------------------------------------------
def _reduce_grid(n: int, d: int, itemsize: int):
    """Common grid / index-map setup for the fit & update reductions."""
    r = _row_tile(n, d * itemsize, block_bytes=_REDUCE_BLOCK_BYTES,
                  cap=_ROW_TILE_CAP_REDUCE, min_steps=_CORE_SPLIT)
    nb = pl.cdiv(n, r)                       # total logical row blocks
    bpc = pl.cdiv(nb, _CORE_SPLIT)           # blocks per core
    masked = (n % r != 0) or (_CORE_SPLIT * bpc != nb)
    if _CORE_SPLIT * bpc == nb:
        x_map = lambda c, i: (c * bpc + i, 0)
    else:                                    # clamp beyond-end blocks (fully masked in-kernel)
        x_map = lambda c, i: (jnp.minimum(c * bpc + i, nb - 1), 0)
    out_map = lambda c, i: (c, 0, 0)
    return r, bpc, masked, x_map, out_map


def fit_stats(x):
    """torch.var_mean(x, dim=(0, *extra_dims), keepdim=True) -> (mean, var), (1, D) f32."""
    d = x.shape[-1]
    n = math.prod(x.shape[:-1])
    x2 = x.reshape(n, d)
    r, bpc, masked, x_map, out_map = _reduce_grid(n, d, x.dtype.itemsize)
    kern = functools.partial(_fit_kernel, n_rows=n, rows_per_block=r,
                             blocks_per_core=bpc, masked_path=masked)
    sums, sqs = pl.pallas_call(
        kern,
        out_shape=(jax.ShapeDtypeStruct((_CORE_SPLIT, 1, d), jnp.float32),
                   jax.ShapeDtypeStruct((_CORE_SPLIT, 1, d), jnp.float32)),
        grid=(_CORE_SPLIT, bpc),
        in_specs=[pl.BlockSpec((r, d), x_map)],
        out_specs=(pl.BlockSpec((1, 1, d), out_map),
                   pl.BlockSpec((1, 1, d), out_map)),
        compiler_params=pltpu.CompilerParams(
            dimension_semantics=("parallel", "arbitrary"),
            vmem_limit_bytes=_VMEM_LIMIT),
    )(x2)
    # Tiny (2, D) epilogue: combine per-core partials, finalize mean / unbiased var.
    s = jnp.sum(sums, axis=0)                 # (1, D)
    sq = jnp.sum(sqs, axis=0)                 # (1, D)
    nf = float(n)
    mean = s / nf
    var = (sq - nf * mean * mean) / (nf - 1.0)   # ddof=1, as torch.var_mean
    return mean, var


def update_stats(x, means, m2, n_old):
    """Running-stat update (n > 0 branch) -> (new_mean, new_var, new_m2)."""
    d = x.shape[-1]
    n = math.prod(x.shape[:-1])
    batch_len = int(x.shape[0])
    x2 = x.reshape(n, d)
    means32 = means.astype(jnp.float32)
    r, bpc, masked, x_map, out_map = _reduce_grid(n, d, x.dtype.itemsize)
    kern = functools.partial(_update_kernel, n_rows=n, rows_per_block=r,
                             blocks_per_core=bpc, masked_path=masked)
    sum_d_p, sum_d2_p = pl.pallas_call(
        kern,
        out_shape=(jax.ShapeDtypeStruct((_CORE_SPLIT, 1, d), jnp.float32),
                   jax.ShapeDtypeStruct((_CORE_SPLIT, 1, d), jnp.float32)),
        grid=(_CORE_SPLIT, bpc),
        in_specs=[pl.BlockSpec((r, d), x_map),
                  pl.BlockSpec((1, d), lambda c, i: (0, 0))],
        out_specs=(pl.BlockSpec((1, 1, d), out_map),
                   pl.BlockSpec((1, 1, d), out_map)),
        compiler_params=pltpu.CompilerParams(
            dimension_semantics=("parallel", "arbitrary"),
            vmem_limit_bytes=_VMEM_LIMIT),
    )(x2, means32)
    # Tiny epilogue mirroring IterativeNormLayer.update (n > 0):
    #   d_mean    = mean(delta)/n_new * batch_len
    #   sum(d*d2) = sum(delta^2) - sum(delta)*d_mean
    sum_d = jnp.sum(sum_d_p, axis=0)          # (1, D)
    sum_d2 = jnp.sum(sum_d2_p, axis=0)        # (1, D)
    red_n = float(n)
    n_new = float(n_old + batch_len)
    d_mean = (sum_d / red_n / n_new) * batch_len
    new_mean = means32 + d_mean
    new_m2 = m2.astype(jnp.float32) + ((sum_d2 - sum_d * d_mean) / red_n) * batch_len
    new_var = new_m2 / n_new
    return new_mean, new_var, new_m2


def normalize(x, means, var):
    """(x - mean) / (sqrt(var) + eps), tiled over the flattened (B*S, D) view."""
    orig_shape = x.shape
    d = orig_shape[-1]
    n = math.prod(orig_shape[:-1])
    x2 = x.reshape(n, d)
    # Size from the native input + output itemsize; ensure >= 4 parallel steps
    # (2 per TensorCore on v7x) so both cores get work.
    bytes_per_row = d * (x.dtype.itemsize + x.dtype.itemsize)
    r = _row_tile(n, bytes_per_row, block_bytes=_NORM_BLOCK_BYTES,
                  cap=_ROW_TILE_CAP_NORM, min_steps=4)
    grid = (pl.cdiv(n, r),)
    out = pl.pallas_call(
        _normalize_kernel,
        out_shape=jax.ShapeDtypeStruct((n, d), x.dtype),
        grid=grid,
        in_specs=[pl.BlockSpec((r, d), lambda i: (i, 0)),
                  pl.BlockSpec((1, d), lambda i: (0, 0)),
                  pl.BlockSpec((1, d), lambda i: (0, 0))],
        out_specs=pl.BlockSpec((r, d), lambda i: (i, 0)),
        compiler_params=pltpu.CompilerParams(
            dimension_semantics=("parallel",),
            vmem_limit_bytes=_VMEM_LIMIT),
    )(x2, means.astype(jnp.float32), var.astype(jnp.float32))
    return out.reshape(orig_shape)


# --------------------------------------------------------------------------
# Module-equivalent wrapper (state bookkeeping in plain Python/JAX)
# --------------------------------------------------------------------------
class IterativeNormLayer:
    """JAX/Pallas port of mattstools IterativeNormLayer for (B, S, D) inputs
    with inpt_dim=(S, D), extra_dims=(0,)."""

    def __init__(self, inpt_dim, means=None, vars=None, n=0,
                 max_n=100000, extra_dims=(0,)):
        if (means is None) ^ (vars is None):
            raise ValueError("Either both or neither of means/vars must be given")
        assert len(inpt_dim) == 2 and tuple(extra_dims) == (0,), \
            "this port implements the (S, D) / extra_dims=(0,) configuration"
        s, d = inpt_dim
        self.inpt_dim = (s, d)
        self.stat_dim = (1, 1, d)                             # as in the PyTorch module
        self.max_n = max_n
        self.n = int(n)
        # stats kept lane-dense as (1, D); reshape to stat_dim is free glue.
        self.means = (jnp.zeros((1, d), jnp.float32) if means is None
                      else jnp.asarray(means, jnp.float32).reshape(1, d))
        self.vars = (jnp.ones((1, d), jnp.float32) if vars is None
                     else jnp.asarray(vars, jnp.float32).reshape(1, d))
        # m2 init mirrors the PyTorch buffer registration exactly.
        self.m2 = (jnp.ones((1, d), jnp.float32) if vars is None
                   else jnp.asarray(vars, jnp.float32).reshape(1, d))
        self.frozen = bool((means is not None and vars is not None)
                           or self.n > self.max_n)

    def _update(self, x):
        self.frozen = bool(self.n >= self.max_n)
        if self.frozen:
            return
        if self.n == 0:
            mean, var = fit_stats(x)                          # tiled Pallas reduction
            self.means, self.vars = mean, var
            self.n = int(x.shape[0])
            self.m2 = var * self.n
            return
        new_mean, new_var, new_m2 = update_stats(x, self.means, self.m2, self.n)
        self.n += int(x.shape[0])
        self.means, self.vars, self.m2 = new_mean, new_var, new_m2

    def forward(self, x, mask=None, training=True):
        if mask is not None:
            # TODO(synk): masked (boolean gather/scatter) path of the PyTorch forward
            # is data-dependent indexing with no clean static Pallas tiling here.
            raise NotImplementedError("mask path not implemented")
        # NOTE: torch.set_grad_enabled / track_grad_* has no Pallas analogue.
        if (not self.frozen) and training:
            self._update(x)
        return normalize(x, self.means, self.vars)            # tiled elementwise kernel


# --------------------------------------------------------------------------
if __name__ == "__main__":
    key = jax.random.PRNGKey(0)
    B, S, D = 4, 8, 128
    k1, k2, k3 = jax.random.split(key, 3)
    x1 = jax.random.normal(k1, (B, S, D), jnp.float32) * 2.0 + 1.5
    x2 = jax.random.normal(k2, (B, S, D), jnp.float32) * 0.5 - 0.3

    layer = IterativeNormLayer((S, D), extra_dims=(0,))

    y1 = layer.forward(x1, training=True)    # n == 0  -> fit kernel + normalize
    y2 = layer.forward(x2, training=True)    # n  > 0  -> update kernel + normalize
    y3 = layer.forward(x2, training=False)   # frozen-style normalize only
    jax.block_until_ready((y1, y2, y3))

    # --- reference check: first forward (fit path) -------------------------
    ref_mean = jnp.mean(x1, axis=(0, 1), keepdims=True)
    ref_var = jnp.var(x1, axis=(0, 1), ddof=1, keepdims=True)   # unbiased, as torch.var_mean
    ref_y1 = (x1 - ref_mean) / (jnp.sqrt(ref_var) + EPS)
    assert float(jnp.max(jnp.abs(y1 - ref_y1))) < 1e-4

    # --- reference check: second forward (running-update path) -------------
    n0 = B
    m = ref_mean
    m2 = ref_var * n0
    n_new = n0 + B
    delta = x2 - m
    m_new = m + (delta / n_new).mean(axis=(0, 1), keepdims=True) * B
    delta2 = x2 - m_new
    m2_new = m2 + (delta * delta2).mean(axis=(0, 1), keepdims=True) * B
    v_new = m2_new / n_new
    ref_y2 = (x2 - m_new) / (jnp.sqrt(v_new) + EPS)
    assert float(jnp.max(jnp.abs(y2 - ref_y2))) < 5e-4
    assert float(jnp.max(jnp.abs(y3 - ref_y2))) < 5e-4          # frozen path uses same stats

    # --- odd row count: exercises boundary masking + clamped block index ----
    B2, S2 = 5, 7                                               # B2*S2 = 35 rows
    x3 = jax.random.normal(k3, (B2, S2, D), jnp.float32) * 1.3 + 0.7
    layer2 = IterativeNormLayer((S2, D), extra_dims=(0,))
    y4 = layer2.forward(x3, training=True)
    jax.block_until_ready(y4)
    r_mean = jnp.mean(x3, axis=(0, 1), keepdims=True)
    r_var = jnp.var(x3, axis=(0, 1), ddof=1, keepdims=True)
    ref_y4 = (x3 - r_mean) / (jnp.sqrt(r_var) + EPS)
    assert float(jnp.max(jnp.abs(y4 - ref_y4))) < 1e-4

    print("KERNEL_OK")
</pallas_src>

<mosaic_0001>
module attributes {stable_mosaic.version = 11 : i64} {
  func.func @_fit_kernel(%arg0: i32, %arg1: i32, %arg2: memref<16x128xf32, #tpu.memory_space<vmem>>, %arg3: memref<1x1x128xf32, #tpu.memory_space<vmem>>, %arg4: memref<1x1x128xf32, #tpu.memory_space<vmem>>) attributes {dimension_semantics = [#tpu.dimension_semantics<parallel>, #tpu.dimension_semantics<arbitrary>], iteration_bounds = array<i64: 2, 1>, scalar_prefetch = 0 : i64, scratch_operands = 0 : i64, tpu.core_type = #tpu.core_type<tc>, window_params = [{transform_indices = @transform_0, window_bounds = array<i64: 16, 128>}, {transform_indices = @transform_1, window_bounds = array<i64: 1, 1, 128>}, {transform_indices = @transform_2, window_bounds = array<i64: 1, 1, 128>}]} {
    %c0_i32 = arith.constant 0 : i32
    %0 = arith.cmpi eq, %arg1, %c0_i32 : i32
    %1 = arith.extui %0 : i1 to i32
    %c0_i32_0 = arith.constant 0 : i32
    %2 = arith.cmpi ne, %1, %c0_i32_0 : i32
    scf.if %2 {
      %cst_15 = arith.constant 0.000000e+00 : f32
      %17 = vector.broadcast %cst_15 : f32 to vector<1x1x128xf32>
      %c0_16 = arith.constant 0 : index
      %c0_17 = arith.constant 0 : index
      %c0_18 = arith.constant 0 : index
      %18 = vector.load %arg3[%c0_16, %c0_17, %c0_18] : memref<1x1x128xf32, #tpu.memory_space<vmem>>, vector<1x1x128xf32>
      tpu.vector_store %arg3[%c0_16, %c0_17, %c0_18], %17 {strides = array<i32>} : memref<1x1x128xf32, #tpu.memory_space<vmem>>, vector<1x1x128xf32>,
      %cst_19 = arith.constant 0.000000e+00 : f32
      %19 = vector.broadcast %cst_19 : f32 to vector<1x1x128xf32>
      %c0_20 = arith.constant 0 : index
      %c0_21 = arith.constant 0 : index
      %c0_22 = arith.constant 0 : index
      %20 = vector.load %arg4[%c0_20, %c0_21, %c0_22] : memref<1x1x128xf32, #tpu.memory_space<vmem>>, vector<1x1x128xf32>
      tpu.vector_store %arg4[%c0_20, %c0_21, %c0_22], %19 {strides = array<i32>} : memref<1x1x128xf32, #tpu.memory_space<vmem>>, vector<1x1x128xf32>,
    } else {
    }
    %c0 = arith.constant 0 : index
    %c0_1 = arith.constant 0 : index
    %3 = vector.load %arg2[%c0, %c0_1] : memref<16x128xf32, #tpu.memory_space<vmem>>, vector<16x128xf32>
    %c0_2 = arith.constant 0 : index
    %c0_3 = arith.constant 0 : index
    %c0_4 = arith.constant 0 : index
    %4 = vector.load %arg3[%c0_2, %c0_3, %c0_4] : memref<1x1x128xf32, #tpu.memory_space<vmem>>, vector<1x1x128xf32>
    %cst = arith.constant dense<0.000000e+00> : vector<128xf32>
    %5 = vector.multi_reduction <add>, %3, %cst [0] : vector<16x128xf32> to vector<128xf32>
    %6 = vector.shape_cast %5 : vector<128xf32> to vector<1x128xf32>
    %7 = vector.shape_cast %6 : vector<1x128xf32> to vector<1x1x128xf32>
    %8 = arith.addf %4, %7 : vector<1x1x128xf32>
    %c0_5 = arith.constant 0 : index
    %c0_6 = arith.constant 0 : index
    %c0_7 = arith.constant 0 : index
    %9 = vector.load %arg3[%c0_5, %c0_6, %c0_7] : memref<1x1x128xf32, #tpu.memory_space<vmem>>, vector<1x1x128xf32>
    tpu.vector_store %arg3[%c0_5, %c0_6, %c0_7], %8 {strides = array<i32>} : memref<1x1x128xf32, #tpu.memory_space<vmem>>, vector<1x1x128xf32>,
    %c0_8 = arith.constant 0 : index
    %c0_9 = arith.constant 0 : index
    %c0_10 = arith.constant 0 : index
    %10 = vector.load %arg4[%c0_8, %c0_9, %c0_10] : memref<1x1x128xf32, #tpu.memory_space<vmem>>, vector<1x1x128xf32>
    %11 = arith.mulf %3, %3 : vector<16x128xf32>
    %cst_11 = arith.constant dense<0.000000e+00> : vector<128xf32>
    %12 = vector.multi_reduction <add>, %11, %cst_11 [0] : vector<16x128xf32> to vector<128xf32>
    %13 = vector.shape_cast %12 : vector<128xf32> to vector<1x128xf32>
    %14 = vector.shape_cast %13 : vector<1x128xf32> to vector<1x1x128xf32>
    %15 = arith.addf %10, %14 : vector<1x1x128xf32>
    %c0_12 = arith.constant 0 : index
    %c0_13 = arith.constant 0 : index
    %c0_14 = arith.constant 0 : index
    %16 = vector.load %arg4[%c0_12, %c0_13, %c0_14] : memref<1x1x128xf32, #tpu.memory_space<vmem>>, vector<1x1x128xf32>
    tpu.vector_store %arg4[%c0_12, %c0_13, %c0_14], %15 {strides = array<i32>} : memref<1x1x128xf32, #tpu.memory_space<vmem>>, vector<1x1x128xf32>,
    return
  }
  func.func @transform_0(%arg0: i32, %arg1: i32) -> (i32, i32) {
    %c1_i32 = arith.constant 1 : i32
    %0 = arith.muli %arg0, %c1_i32 : i32
    %1 = arith.addi %0, %arg1 : i32
    %c0_i32 = arith.constant 0 : i32
    %c0_i32_0 = arith.constant 0 : i32
    return %1, %c0_i32 : i32, i32
  }
  func.func @transform_1(%arg0: i32, %arg1: i32) -> (i32, i32, i32) {
    %c0_i32 = arith.constant 0 : i32
    %c0_i32_0 = arith.constant 0 : i32
    %c0_i32_1 = arith.constant 0 : i32
    return %arg0, %c0_i32, %c0_i32_0 : i32, i32, i32
  }
  func.func @transform_2(%arg0: i32, %arg1: i32) -> (i32, i32, i32) {
    %c0_i32 = arith.constant 0 : i32
    %c0_i32_0 = arith.constant 0 : i32
    %c0_i32_1 = arith.constant 0 : i32
    return %arg0, %c0_i32, %c0_i32_0 : i32, i32, i32
  }
}

</mosaic_0001>

<llo_original>
// kernel: tpu_custom_call.1
$region0: #{tpu_custom_call.1}
  #allocation0 [shape = 'u32[]', space=smem, size = 0x4, offset = 0x4, fixed_abs, tag = 'smem constant byte address 0x4 - core index']
  #allocation1 [shape = 'u32[144,128]{1,0:T(1,128)}', space=vmem, size = 0x12000, scoped, tag = 'internal scratch']
  %s0 = inlined_call_operand.hbm [shape: f32[32,128], index: 0, kind: input, shape index: {}]
  %s1 = inlined_call_operand.hbm [shape: f32[2,1,128], index: 1, kind: output, shape index: {0}]
  %s2 = inlined_call_operand.hbm [shape: f32[2,1,128], index: 2, kind: output, shape index: {1}]
  %3 = xla_tuple %s1, %s2
  %s4 = sld [smem:[#allocation0]]
  $region53: #{tpu_custom_call.1} parent=0
    _
  %s6 = ssub.s32 1, %s4
  %s7 = scalar_select 0, %s6, %s4
  $region1: #{tpu_custom_call.1} parent=0
    #allocation2 [shape = 'u8[16384]{0}', space=vmem, size = 0x4000, scoped, tag = 'input window, operand 0']
    #allocation3 [shape = 's32[2]{0}', space=sflag, size = 0x8, scoped, tag = 'scoped memory for tpu_custom_call.1']
    #allocation4 [shape = 's32[2]{0}', space=sflag, size = 0x8, scoped, tag = 'scoped memory for tpu_custom_call.1']
    #allocation5 [shape = 'u8[1024]{0}', space=vmem, size = 0x400, scoped, tag = 'output window, operand 0']
    #allocation6 [shape = 'u8[1024]{0}', space=vmem, size = 0x400, scoped, tag = 'output window, operand 1']
    #allocation7 [shape = 's32[2]{0}', space=sflag, size = 0x8, scoped, tag = 'scoped memory for tpu_custom_call.1']
    %8 = vsyncpa [#allocation3], 0
    %s9 = scalar_lea.sflag [#allocation3], 1
    %10 = vsyncpa %s9, 0
    %11 = vsyncpa [#allocation4], 0
    %s12 = scalar_lea.sflag [#allocation4], 1
    %13 = vsyncpa %s12, 0
    %14 = vsyncpa [#allocation7], 0
    %s15 = scalar_lea.sflag [#allocation7], 1
    %16 = vsyncpa %s15, 0
    loop: start=0, step=1, limit=4
    $region2: #{tpu_custom_call.1} parent=1 // loop_pre_header
      _
    $region3: #{tpu_custom_call.1} parent=1 // loop_header
      %s18 = sphi 0, %s22
      %p19 = scmp.ge.s32.totalorder %s18, 4
      %s25 = sphi 0, %s37
      %s26 = sphi 0, %s33
      %s27 = sphi 0, %s25
      %s28 = sphi 0, %s26
      %s29 = sphi 0, %s27
      %s30 = sphi 0, %s28
      %s42 = sphi 0, %s44
      %s45 = sphi 0, %s42
      %s46 = sphi 0, %s45
      %s62 = sphi 0, %s46
      %s68 = sphi 0, %s70
      %s71 = sphi 0, %s68
      %s72 = sphi 0, %s71
      %s88 = sphi 0, %s72
      %s94 = sphi 0, %s96
      %s97 = sphi 0, %s94
      %s98 = sphi 0, %s97
      %s114 = sphi 0, %s98
    $region4: #{tpu_custom_call.1} parent=1 // loop_header_branch
      %21 = sbr.rel (%p19) target = $region8
    $region5: #{tpu_custom_call.1} parent=1 // loop_body
      %s23 = ssub.s32 %s18, 1
      %s24 = ssub.s32 %s18, 2
      %s31 = sadd.s32 1, %s26
      %p32 = scmp.ge.s32.totalorder %s31, 1
      %s33 = scalar_select %p32, 0, %s31
      %s34 = sadd.s32 1, %s25
      %s35 = scalar_select %p32, %s34, %s25
      %p36 = scmp.ge.s32.totalorder %s35, 2
      %s37 = scalar_select %p36, 0, %s35
      %s38 = sadd.s32 %s25, %s26
      %s39 = sadd.s32 %s37, %s33
      %s40 = ssub.s32 %s38, %s39
      %p41 = scmp.eq.s32.totalorder %s40, 0
      %s43 = sadd.s32 %s42, 1
      %s44 = scalar_select %p41, %s42, %s43
      %p47 = pneg %p41
      %p48 = scmp.eq.s32.totalorder %s18, 1
      %p49 = por %p47, %p48
      %p50 = scmp.ne.s32.totalorder %s42, %s45
      %p51 = scmp.eq.s32.totalorder %s18, 0
      %p52 = por %p50, %p51
      %p53 = scmp.ne.s32.totalorder %s42, %s45
      %p54 = scmp.eq.s32.totalorder %s23, 1
      %p55 = por %p53, %p54
      %p56 = scmp.ne.s32.totalorder %s45, %s46
      %p57 = scmp.eq.s32.totalorder %s23, 0
      %p58 = por %p56, %p57
      %p59 = scmp.ne.s32.totalorder %s45, %s46
      %p60 = scmp.eq.s32.totalorder %s24, 1
      %p61 = por %p59, %p60
      %p63 = scmp.ne.s32.totalorder %s46, %s62
      %p64 = scmp.eq.s32.totalorder %s24, 0
      %p65 = por %p63, %p64
      %s66 = ssub.s32 %s25, %s37
      %p67 = scmp.eq.s32.totalorder %s66, 0
      %s69 = sadd.s32 %s68, 1
      %s70 = scalar_select %p67, %s68, %s69
      %p73 = pneg %p67
      %p74 = scmp.eq.s32.totalorder %s18, 1
      %p75 = por %p73, %p74
      %p76 = scmp.ne.s32.totalorder %s68, %s71
      %p77 = scmp.eq.s32.totalorder %s18, 0
      %p78 = por %p76, %p77
      %p79 = scmp.ne.s32.totalorder %s68, %s71
      %p80 = scmp.eq.s32.totalorder %s23, 1
      %p81 = por %p79, %p80
      %p82 = scmp.ne.s32.totalorder %s71, %s72
      %p83 = scmp.eq.s32.totalorder %s23, 0
      %p84 = por %p82, %p83
      %p85 = scmp.ne.s32.totalorder %s71, %s72
      %p86 = scmp.eq.s32.totalorder %s24, 1
      %p87 = por %p85, %p86
      %p89 = scmp.ne.s32.totalorder %s72, %s88
      %p90 = scmp.eq.s32.totalorder %s24, 0
      %p91 = por %p89, %p90
      %s92 = ssub.s32 %s25, %s37
      %p93 = scmp.eq.s32.totalorder %s92, 0
      %s95 = sadd.s32 %s94, 1
      %s96 = scalar_select %p93, %s94, %s95
      %p99 = pneg %p93
      %p100 = scmp.eq.s32.totalorder %s18, 1
      %p101 = por %p99, %p100
      %p102 = scmp.ne.s32.totalorder %s94, %s97
      %p103 = scmp.eq.s32.totalorder %s18, 0
      %p104 = por %p102, %p103
      %p105 = scmp.ne.s32.totalorder %s94, %s97
      %p106 = scmp.eq.s32.totalorder %s23, 1
      %p107 = por %p105, %p106
      %p108 = scmp.ne.s32.totalorder %s97, %s98
      %p109 = scmp.eq.s32.totalorder %s23, 0
      %p110 = por %p108, %p109
      %p111 = scmp.ne.s32.totalorder %s97, %s98
      %p112 = scmp.eq.s32.totalorder %s24, 1
      %p113 = por %p111, %p112
      %p115 = scmp.ne.s32.totalorder %s98, %s114
      %p116 = scmp.eq.s32.totalorder %s24, 0
      %p117 = por %p115, %p116
      %p118 = scmp.le.s32.totalorder 1, %s18
      %p119 = scmp.lt.s32.totalorder %s18, 3
      %p120 = pnand %p118, %p119
      %p121 = pneg %p120
      // Predicated region
      $region9: #{tpu_custom_call.1} parent=5 // pred_check
        _
      $region10: #{tpu_custom_call.1} parent=5 // pred_check_branch
        %123 = sbr.rel (%p120) target = $region12
      $region11: #{tpu_custom_call.1} parent=5 // pred_region
        %s124 = ssub.s32 %s18, 1
      $region12: #{tpu_custom_call.1} parent=5 // pred_fallthru
        _
      %p125 = scmp.lt.s32.totalorder %s18, 2
      // Predicated region
      $region13: #{tpu_custom_call.1} parent=5 // pred_check
        %p126 = pneg %p125
      $region14: #{tpu_custom_call.1} parent=5 // pred_check_branch
        %128 = sbr.rel (%p126) target = $region16
      $region15: #{tpu_custom_call.1} parent=5 // pred_region
        // Predicated region
        $region17: #{tpu_custom_call.1} parent=15 // pred_check
          %p129 = pneg %p52
        $region18: #{tpu_custom_call.1} parent=15 // pred_check_branch
          %131 = sbr.rel (%p129) target = $region20
        $region19: #{tpu_custom_call.1} parent=15 // pred_region
          %s132 = sand.u32 %s42, 1
          %s133 = scalar_lea.sflag [#allocation3], %s132
          %s134 = sand.u32 %s42, 1
          %s135 = smul.addr %s134, 16
          %s136 = scalar_lea.vmem [#allocation2], %s135
          %s137 = sadd.s32 %s25, %s26
          %s138 = smul.u32 2, %s137
          %s140 = ssub.s32 256, 256
          %141 = vsyncadd %s133, %s140
          %s142 = smul.addr %s138, 128
          %s143 = scalar_lea.hbm %s0, %s142
          %s144 = sshll.u32 %s136, 4
          %s145 = int_to_ptr.vmem [resolvable:$true] %s144
          %150 = dma.hbm_to_vmem [thread:$0]  %s143, 256, %s145, %s133, 128, 128, 8
        $region20: #{tpu_custom_call.1} parent=15 // pred_fallthru
          _
      $region16: #{tpu_custom_call.1} parent=5 // pred_fallthru
        _
      %p151 = scmp.le.s32.totalorder 1, %s18
      %p152 = scmp.lt.s32.totalorder %s18, 3
      %p153 = pnand %p151, %p152
      %p154 = pneg %p153
      // Predicated region
      $region21: #{tpu_custom_call.1} parent=5 // pred_check
        _
      $region22: #{tpu_custom_call.1} parent=5 // pred_check_branch
        %156 = sbr.rel (%p153) target = $region24
      $region23: #{tpu_custom_call.1} parent=5 // pred_region
        %s157 = ssub.s32 %s18, 1
        %s158 = sand.u32 %s45, 1
        %s159 = scalar_lea.sflag [#allocation3], %s158
        %s160 = sand.u32 %s45, 1
        %s161 = smul.addr %s160, 16
        %s162 = scalar_lea.vmem [#allocation2], %s161
        // Predicated region
        $region25: #{tpu_custom_call.1} parent=23 // pred_check
          %p163 = pneg %p58
        $region26: #{tpu_custom_call.1} parent=23 // pred_check_branch
          %165 = sbr.rel (%p163) target = $region28
        $region27: #{tpu_custom_call.1} parent=23 // pred_region
          %166 = dma.done %s159, 256
        $region28: #{tpu_custom_call.1} parent=23 // pred_fallthru
          _
        %s167 = sand.u32 %s45, 1
        %s168 = scalar_lea.sflag [#allocation3], %s167
        %s169 = sand.u32 %s45, 1
        %s170 = smul.addr %s169, 16
        %s171 = scalar_lea.vmem [#allocation2], %s170
        %p172 = pneg %p58
        %p173 = pneg %p55
        %p174 = pneg %p84
        %p175 = pneg %p81
        %s176 = sand.u32 %s71, 1
        %s177 = scalar_lea.sflag [#allocation4], %s176
        %s178 = sand.u32 %s71, 1
        %s179 = scalar_lea.vmem [#allocation5], %s178
        %p180 = pneg %p110
        %p181 = pneg %p107
        %s182 = sand.u32 %s97, 1
        %s183 = scalar_lea.sflag [#allocation7], %s182
        %s184 = sand.u32 %s97, 1
        %s185 = scalar_lea.vmem [#allocation6], %s184
        %s186 = sadd.s32 %s27, %s28
        %s187 = smul.u32 2, %s186
        %p188 = scmp.eq.s32.totalorder %s28, 0
        // Predicated region
        $region29: #{tpu_custom_call.1} parent=23 // pred_check
          %p189 = pneg %p188
        $region30: #{tpu_custom_call.1} parent=23 // pred_check_branch
          %191 = sbr.rel (%p189) target = $region32
        $region31: #{tpu_custom_call.1} parent=23 // pred_region
          %192 = vst [vmem:[%s179] sm:$0x1] 0.0
          %193 = vst [vmem:[%s185] sm:$0x1] 0.0
        $region32: #{tpu_custom_call.1} parent=23 // pred_fallthru
          _
        %v194 = vld [vmem:[%s162] sm:$0xff]
        %v195 = vld [vmem:[%s162 + $0x8] sm:$0xff]
        %v196 = vld [vmem:[%s179] sm:$0x1]
        %v197 = vadd.f32 %v194, %v195
        %v198 = vrot.slane %v197, 4
        %v199 = vadd.f32 %v197, %v198
        %v200 = vrot.slane %v199, 2
        %v201 = vadd.f32 %v199, %v200
        %v202 = vrot.slane %v201, 1
        %v203 = vadd.f32 %v201, %v202
        %v204 = vadd.f32 %v196, %v203
        %205 = vst [vmem:[%s179] sm:$0x1] %v204
        %v206 = vld [vmem:[%s185] sm:$0x1]
        %v207 = vmul.f32 %v194, %v194
        %v208 = vmul.f32 %v195, %v195
        %v209 = vadd.f32 %v207, %v208
        %v210 = vrot.slane %v209, 4
        %v211 = vadd.f32 %v209, %v210
        %v212 = vrot.slane %v211, 2
        %v213 = vadd.f32 %v211, %v212
        %v214 = vrot.slane %v213, 1
        %v215 = vadd.f32 %v213, %v214
        %v216 = vadd.f32 %v206, %v215
        %217 = vst [vmem:[%s185] sm:$0x1] %v216
        %s218 = sand.u32 %s71, 1
        %s219 = scalar_lea.sflag [#allocation4], %s218
        %s220 = sand.u32 %s71, 1
        %s221 = scalar_lea.vmem [#allocation5], %s220
        %s222 = sand.u32 %s97, 1
        %s223 = scalar_lea.sflag [#allocation7], %s222
        %s224 = sand.u32 %s97, 1
        %s225 = scalar_lea.vmem [#allocation6], %s224
        // Predicated region
        $region33: #{tpu_custom_call.1} parent=23 // pred_check
          %p226 = pneg %p81
        $region34: #{tpu_custom_call.1} parent=23 // pred_check_branch
          %228 = sbr.rel (%p226) target = $region36
        $region35: #{tpu_custom_call.1} parent=23 // pred_region
          %s230 = ssub.s32 16, 16
          %231 = vsyncadd %s219, %s230
          %s232 = smul.addr %s27, 16
          %s233 = scalar_lea.hbm %s1, %s232
          %s235 = sshll.u32 %s221, 4
          %s236 = int_to_ptr.vmem [resolvable:$true] %s235
          %238 = dma.vmem_to_hbm [thread:$0]  %s236, 16, %s233, %s219
        $region36: #{tpu_custom_call.1} parent=23 // pred_fallthru
          _
        // Predicated region
        $region37: #{tpu_custom_call.1} parent=23 // pred_check
          %p239 = pneg %p107
        $region38: #{tpu_custom_call.1} parent=23 // pred_check_branch
          %241 = sbr.rel (%p239) target = $region40
        $region39: #{tpu_custom_call.1} parent=23 // pred_region
          %s243 = ssub.s32 16, 16
          %244 = vsyncadd %s223, %s243
          %s245 = smul.addr %s27, 16
          %s246 = scalar_lea.hbm %s2, %s245
          %s248 = sshll.u32 %s225, 4
          %s249 = int_to_ptr.vmem [resolvable:$true] %s248
          %251 = dma.vmem_to_hbm [thread:$0]  %s249, 16, %s246, %s223
        $region40: #{tpu_custom_call.1} parent=23 // pred_fallthru
          _
      $region24: #{tpu_custom_call.1} parent=5 // pred_fallthru
        _
      %p252 = scmp.le.s32.totalorder 2, %s18
      // Predicated region
      $region41: #{tpu_custom_call.1} parent=5 // pred_check
        %p253 = pneg %p252
      $region42: #{tpu_custom_call.1} parent=5 // pred_check_branch
        %255 = sbr.rel (%p253) target = $region44
      $region43: #{tpu_custom_call.1} parent=5 // pred_region
        %s256 = ssub.s32 %s18, 2
        // Predicated region
        $region45: #{tpu_custom_call.1} parent=43 // pred_check
          %p257 = pneg %p87
        $region46: #{tpu_custom_call.1} parent=43 // pred_check_branch
          %259 = sbr.rel (%p257) target = $region48
        $region47: #{tpu_custom_call.1} parent=43 // pred_region
          %s260 = sand.u32 %s72, 1
          %s261 = scalar_lea.sflag [#allocation4], %s260
          %s262 = sand.u32 %s72, 1
          %s263 = scalar_lea.vmem [#allocation5], %s262
          %264 = dma.done %s261, 16
        $region48: #{tpu_custom_call.1} parent=43 // pred_fallthru
          _
        // Predicated region
        $region49: #{tpu_custom_call.1} parent=43 // pred_check
          %p265 = pneg %p113
        $region50: #{tpu_custom_call.1} parent=43 // pred_check_branch
          %267 = sbr.rel (%p265) target = $region52
        $region51: #{tpu_custom_call.1} parent=43 // pred_region
          %s268 = sand.u32 %s98, 1
          %s269 = scalar_lea.sflag [#allocation7], %s268
          %s270 = sand.u32 %s98, 1
          %s271 = scalar_lea.vmem [#allocation6], %s270
          %272 = dma.done %s269, 16
        $region52: #{tpu_custom_call.1} parent=43 // pred_fallthru
          _
      $region44: #{tpu_custom_call.1} parent=5 // pred_fallthru
        _
    $region6: #{tpu_custom_call.1} parent=1 // loop_footer
      %s22 = sadd.s32 1, %s18
    $region7: #{tpu_custom_call.1} parent=1 // loop_footer_branch
      %17 = sbr.rel target = $region3
    $region8: #{tpu_custom_call.1} parent=1 // loop_exit
      _
    %273 = vsyncpa [#allocation3], 1
    %s274 = scalar_lea.sflag [#allocation3], 1
    %275 = vsyncpa %s274, 1
    %276 = vsyncpa [#allocation4], 1
    %s277 = scalar_lea.sflag [#allocation4], 1
    %278 = vsyncpa %s277, 1
    %279 = vsyncpa [#allocation7], 1
    %s280 = scalar_lea.sflag [#allocation7], 1
    %281 = vsyncpa %s280, 1

</llo_original>
